<compile_context>
chip_gen: v7x
topology: tpu7x:2x2x1
jax: 0.10.0
libtpu: 0.0.40
codegen_flags: <defaults>
</compile_context>

<pallas_src>
import functools

import jax
import jax.numpy as jnp
from jax.experimental import pallas as pl
from jax.experimental.pallas import tpu as pltpu

C_PAD = 128  # lane width; all channel dims are zero-padded to this.


# ----------------------------------------------------------------------------
# Kernel 1: one block = 3x3 conv (pad=1, bias=False) + LeakyReLU(0.2),
# plus a fused global-average-pool (channel-sum) accumulator.
# ----------------------------------------------------------------------------
def conv_block_kernel(x_ref, w_ref, o_ref, pool_ref):
    """One (batch n, row-tile h) grid cell.

    x_ref   : (1, H, W+2, C)      bf16 VMEM, whole W-padded image (per batch,
                                  j-invariant -> resident across row tiles)
    w_ref   : (9*C, Cout)         bf16 VMEM, tap-major im2col weight (resident)
    o_ref   : (1, TH, W+2, Cout)  bf16 VMEM output row tile (W-padded)
    pool_ref: (1, 1, Cout)        f32 VMEM channel-sum accumulator (per batch)
    """
    h = pl.program_id(1)
    nh = pl.num_programs(1)

    _, H, wp, cin = x_ref.shape
    th = o_ref.shape[1]
    w = wp - 2
    cout = o_ref.shape[-1]

    row0 = pl.multiple_of(h * th, th)

    # Body rows of this tile plus the 1-row halo above/below, all sliced from
    # the resident VMEM image; boundary halo rows are selected to zero.
    body = x_ref[0, pl.ds(row0, th), :, :]                       # (th, wp, C)

    top_idx = jnp.maximum(row0 - 1, 0)
    top = x_ref[0, pl.ds(top_idx, 1), :, :]                      # (1, wp, C)
    top = jnp.where(h > 0, top, jnp.zeros_like(top))

    bot_idx = jnp.minimum(row0 + th, H - 1)
    bot = x_ref[0, pl.ds(bot_idx, 1), :, :]                      # (1, wp, C)
    bot = jnp.where(h < nh - 1, bot, jnp.zeros_like(bot))

    xwin = jnp.concatenate([top, body, bot], axis=0)             # (th+2, wp, C)

    # im2col: one (th*w, 9*C) @ (9*C, Cout) MXU matmul with f32 accumulation.
    patches = jnp.concatenate(
        [xwin[dy:dy + th, dx:dx + w, :] for dy in range(3) for dx in range(3)],
        axis=-1)                                                 # (th, w, 9*C)
    acc = jnp.dot(patches.reshape(th * w, 9 * cin), w_ref[...],
                  preferred_element_type=jnp.float32)            # (th*w, Cout)
    act = jnp.maximum(acc, 0.2 * acc)                            # LeakyReLU(0.2)
    act = act.astype(o_ref.dtype).reshape(th, w, cout)           # bf16

    # Store W-padded (zero halo columns) so the next block's input blocks are
    # plain rectangular tiles.
    zcol = jnp.zeros((th, 1, cout), o_ref.dtype)
    o_ref[...] = jnp.concatenate([zcol, act, zcol], axis=1)[None]

    # Fused global-average-pool: accumulate channel sums (head divides by H*W).
    @pl.when(h == 0)
    def _():
        pool_ref[...] = jnp.zeros_like(pool_ref)

    pool_ref[...] += jnp.sum(act.astype(jnp.float32),
                             axis=(0, 1)).reshape(1, 1, cout)


def conv_block(x_pad, w2d, *, row_tile):
    """x_pad: (N, H, W+2, C) bf16 W-padded activation; w2d: (9*C, Cout) bf16.

    Returns (conv_out (N, H, W+2, Cout) bf16, pool_sums (N, 1, Cout) f32).
    """
    n, h, wp, c = x_pad.shape
    w = wp - 2
    kc, cout = w2d.shape
    assert kc == 9 * c
    assert h % row_tile == 0
    nh = h // row_tile

    flops = 2 * n * h * w * kc * cout
    bytes_accessed = 2 * (x_pad.size + n * h * wp * cout + kc * cout)

    return pl.pallas_call(
        conv_block_kernel,
        out_shape=(
            jax.ShapeDtypeStruct((n, h, wp, cout), x_pad.dtype),
            jax.ShapeDtypeStruct((n, 1, cout), jnp.float32),
        ),
        grid_spec=pltpu.PrefetchScalarGridSpec(
            num_scalar_prefetch=0,
            grid=(n, nh),
            in_specs=[
                # Whole image per batch item; j-invariant -> VMEM-resident
                # across the row-tile axis, refetched only when i changes.
                pl.BlockSpec((1, h, wp, c), lambda i, j: (i, 0, 0, 0)),
                # Weights: constant index_map -> resident in VMEM.
                pl.BlockSpec((kc, cout), lambda i, j: (0, 0)),
            ],
            out_specs=(
                pl.BlockSpec((1, row_tile, wp, cout),
                             lambda i, j: (i, j, 0, 0)),
                pl.BlockSpec((1, 1, cout), lambda i, j: (i, 0, 0)),
            ),
        ),
        compiler_params=pltpu.CompilerParams(
            dimension_semantics=("parallel", "arbitrary"),
        ),
        cost_estimate=pl.CostEstimate(
            flops=flops, transcendentals=0, bytes_accessed=bytes_accessed),
    )(x_pad, w2d)


# ----------------------------------------------------------------------------
# Kernel 2: head = mean-scale + Linear(C, 1) on the fused pooled sums.
# ----------------------------------------------------------------------------
def head_kernel(pool_ref, w_ref, b_ref, o_ref, *, inv_hw):
    pooled = pool_ref[...][:, 0, :] * inv_hw                # (N, C) f32 mean
    o_ref[...] = jnp.dot(pooled, w_ref[...],
                         preferred_element_type=jnp.float32) + b_ref[...]


def head(pool_sums, w_lin, b_lin, *, hw):
    n = pool_sums.shape[0]
    return pl.pallas_call(
        functools.partial(head_kernel, inv_hw=1.0 / float(hw)),
        out_shape=jax.ShapeDtypeStruct((n, 1), jnp.float32),
        in_specs=[pl.BlockSpec(memory_space=pltpu.MemorySpace.VMEM)] * 3,
        out_specs=pl.BlockSpec(memory_space=pltpu.MemorySpace.VMEM),
    )(pool_sums, w_lin, b_lin)


# ----------------------------------------------------------------------------
# Parameter construction + full forward
# ----------------------------------------------------------------------------
def init_params(key, num_blocks, num_channels, c_pad=C_PAD):
    assert num_channels <= c_pad
    params = {"conv": [], "lin_w": None, "lin_b": None}
    cin = 3
    for _ in range(num_blocks):
        key, sub = jax.random.split(key)
        # PyTorch conv weight (Cout, Cin, 3, 3) -> tap-major (9*c_pad, c_pad),
        # zero-padded in both channel dims (padding is exact: padded channels
        # stay identically zero through conv + LeakyReLU).
        w = jax.random.normal(sub, (num_channels, cin, 3, 3), jnp.float32) * 0.2
        w_hwio = jnp.transpose(w, (2, 3, 1, 0))                  # (3,3,cin,cout)
        w_pad = jnp.zeros((3, 3, c_pad, c_pad), jnp.float32)
        w_pad = w_pad.at[:, :, :cin, :num_channels].set(w_hwio)
        params["conv"].append(
            w_pad.reshape(9 * c_pad, c_pad).astype(jnp.bfloat16))
        cin = num_channels
    key, sub = jax.random.split(key)
    w_lin = jax.random.normal(sub, (1, num_channels), jnp.float32) * 0.2
    params["lin_w"] = jnp.zeros((c_pad, 1), jnp.float32).at[
        :num_channels, :].set(w_lin.T)
    key, sub = jax.random.split(key)
    params["lin_b"] = (jax.random.normal(sub, (1,), jnp.float32) * 0.2
                       ).reshape(1, 1)
    return params


def _pick_row_tile(h, max_rows=64):
    t = min(h, max_rows)
    while h % t:
        t -= 1
    return t


def discriminator_forward(params, image_nchw, *, row_tile=None):
    c_pad = params["conv"][0].shape[1]
    x = jnp.transpose(image_nchw, (0, 2, 3, 1)).astype(jnp.float32)  # NHWC
    n, h, w, cin = x.shape
    # One-time glue: channel-pad to the lane width and W-pad with zero halo
    # columns; cast to bf16 (f32 accumulation happens inside the kernels).
    xp = jnp.zeros((n, h, w + 2, c_pad), jnp.float32)
    xp = xp.at[:, :, 1:w + 1, :cin].set(x).astype(jnp.bfloat16)
    if row_tile is None:
        row_tile = _pick_row_tile(h)
    pool = None
    for w2d in params["conv"]:
        xp, pool = conv_block(xp, w2d, row_tile=row_tile)
    return head(pool, params["lin_w"], params["lin_b"], hw=h * w)    # (N, 1)


# ----------------------------------------------------------------------------
# Pure-JAX reference (identical math: bf16 activations, f32 accumulation).
# ----------------------------------------------------------------------------
def reference_forward(params, image_nchw):
    c_pad = params["conv"][0].shape[1]
    x = jnp.transpose(image_nchw, (0, 2, 3, 1)).astype(jnp.float32)
    n, h, w, cin = x.shape
    a = jnp.zeros((n, h, w, c_pad), jnp.float32).at[..., :cin].set(x)
    a = a.astype(jnp.bfloat16)
    for w2d in params["conv"]:
        ap = jnp.pad(a, ((0, 0), (1, 1), (1, 1), (0, 0)))
        patches = jnp.concatenate(
            [ap[:, dy:dy + h, dx:dx + w, :]
             for dy in range(3) for dx in range(3)], axis=-1)
        acc = jnp.einsum("nhwk,kc->nhwc", patches, w2d,
                         preferred_element_type=jnp.float32)
        a = jnp.maximum(acc, 0.2 * acc).astype(jnp.bfloat16)
    pooled = jnp.mean(a.astype(jnp.float32), axis=(1, 2))
    return pooled @ params["lin_w"] + params["lin_b"]


if __name__ == "__main__":
    num_blocks = 2
    num_channels = 8
    key = jax.random.PRNGKey(0)
    key, pkey, xkey = jax.random.split(key, 3)

    params = init_params(pkey, num_blocks, num_channels)
    image = jax.random.normal(xkey, (2, 3, 16, 16), jnp.float32)  # NCHW input

    ref = reference_forward(params, image)
    # Exercise both the multi-row-tile (halo slicing) path and the
    # single-tile path.
    for rt in (4, 16):
        out = discriminator_forward(params, image, row_tile=rt)
        out = jax.block_until_ready(out)
        assert out.shape == (2, 1), out.shape
        assert jnp.allclose(out, ref, atol=1e-2, rtol=1e-2), (rt, out, ref)

    print("KERNEL_OK")
</pallas_src>

<mosaic_0001>
module attributes {stable_mosaic.version = 11 : i64} {
  func.func @conv_block_kernel(%arg0: i32, %arg1: i32, %arg2: memref<1x16x18x128xbf16, #tpu.memory_space<vmem>>, %arg3: memref<1152x128xbf16, #tpu.memory_space<vmem>>, %arg4: memref<1x4x18x128xbf16, #tpu.memory_space<vmem>>, %arg5: memref<1x1x128xf32, #tpu.memory_space<vmem>>) attributes {dimension_semantics = [#tpu.dimension_semantics<parallel>, #tpu.dimension_semantics<arbitrary>], iteration_bounds = array<i64: 2, 4>, scalar_prefetch = 0 : i64, scratch_operands = 0 : i64, tpu.core_type = #tpu.core_type<tc>, window_params = [{transform_indices = @transform_0, window_bounds = array<i64: 1, 16, 18, 128>}, {pipeline_mode = #tpu.pipeline_mode<synchronous>, transform_indices = @transform_1, window_bounds = array<i64: 1152, 128>}, {transform_indices = @transform_2, window_bounds = array<i64: 1, 4, 18, 128>}, {transform_indices = @transform_3, window_bounds = array<i64: 1, 1, 128>}]} {
    %c4_i32 = arith.constant 4 : i32
    %0 = arith.muli %arg1, %c4_i32 : i32
    %1 = tpu.assume_multiple %0, 4 : i32
    %c0 = arith.constant 0 : index
    %2 = arith.index_cast %1 : i32 to index
    %c0_0 = arith.constant 0 : index
    %c0_1 = arith.constant 0 : index
    %3 = vector.load %arg2[%c0, %2, %c0_0, %c0_1] : memref<1x16x18x128xbf16, #tpu.memory_space<vmem>>, vector<1x4x18x128xbf16>
    %4 = vector.shape_cast %3 : vector<1x4x18x128xbf16> to vector<4x18x128xbf16>
    %c1_i32 = arith.constant 1 : i32
    %5 = arith.subi %1, %c1_i32 : i32
    %c0_i32 = arith.constant 0 : i32
    %6 = arith.maxsi %5, %c0_i32 : i32
    %c0_2 = arith.constant 0 : index
    %7 = arith.index_cast %6 : i32 to index
    %c0_3 = arith.constant 0 : index
    %c0_4 = arith.constant 0 : index
    %8 = vector.load %arg2[%c0_2, %7, %c0_3, %c0_4] : memref<1x16x18x128xbf16, #tpu.memory_space<vmem>>, vector<1x1x18x128xbf16>
    %9 = vector.shape_cast %8 : vector<1x1x18x128xbf16> to vector<1x18x128xbf16>
    %c0_i32_5 = arith.constant 0 : i32
    %10 = arith.cmpi sgt, %arg1, %c0_i32_5 : i32
    %cst = arith.constant 0.000000e+00 : bf16
    %11 = vector.broadcast %cst : bf16 to vector<1x18x128xbf16>
    %12 = arith.select %10, %9, %11 : vector<1x18x128xbf16>
    %c4_i32_6 = arith.constant 4 : i32
    %13 = arith.addi %1, %c4_i32_6 : i32
    %c15_i32 = arith.constant 15 : i32
    %14 = arith.minsi %13, %c15_i32 : i32
    %c0_7 = arith.constant 0 : index
    %15 = arith.index_cast %14 : i32 to index
    %c0_8 = arith.constant 0 : index
    %c0_9 = arith.constant 0 : index
    %16 = vector.load %arg2[%c0_7, %15, %c0_8, %c0_9] : memref<1x16x18x128xbf16, #tpu.memory_space<vmem>>, vector<1x1x18x128xbf16>
    %17 = vector.shape_cast %16 : vector<1x1x18x128xbf16> to vector<1x18x128xbf16>
    %c3_i32 = arith.constant 3 : i32
    %18 = arith.cmpi slt, %arg1, %c3_i32 : i32
    %cst_10 = arith.constant 0.000000e+00 : bf16
    %19 = vector.broadcast %cst_10 : bf16 to vector<1x18x128xbf16>
    %20 = arith.select %18, %17, %19 : vector<1x18x128xbf16>
    %21 = tpu.concatenate %12, %4, %20 in 0 : vector<1x18x128xbf16>, vector<4x18x128xbf16>, vector<1x18x128xbf16> -> vector<6x18x128xbf16>
    %22 = vector.extract_strided_slice %21 {offsets = [0, 0, 0], sizes = [4, 16, 128], strides = [1, 1, 1]} : vector<6x18x128xbf16> to vector<4x16x128xbf16>
    %23 = vector.extract_strided_slice %21 {offsets = [0, 1, 0], sizes = [4, 16, 128], strides = [1, 1, 1]} : vector<6x18x128xbf16> to vector<4x16x128xbf16>
    %24 = vector.extract_strided_slice %21 {offsets = [0, 2, 0], sizes = [4, 16, 128], strides = [1, 1, 1]} : vector<6x18x128xbf16> to vector<4x16x128xbf16>
    %25 = vector.extract_strided_slice %21 {offsets = [1, 0, 0], sizes = [4, 16, 128], strides = [1, 1, 1]} : vector<6x18x128xbf16> to vector<4x16x128xbf16>
    %26 = vector.extract_strided_slice %21 {offsets = [1, 1, 0], sizes = [4, 16, 128], strides = [1, 1, 1]} : vector<6x18x128xbf16> to vector<4x16x128xbf16>
    %27 = vector.extract_strided_slice %21 {offsets = [1, 2, 0], sizes = [4, 16, 128], strides = [1, 1, 1]} : vector<6x18x128xbf16> to vector<4x16x128xbf16>
    %28 = vector.extract_strided_slice %21 {offsets = [2, 0, 0], sizes = [4, 16, 128], strides = [1, 1, 1]} : vector<6x18x128xbf16> to vector<4x16x128xbf16>
    %29 = vector.extract_strided_slice %21 {offsets = [2, 1, 0], sizes = [4, 16, 128], strides = [1, 1, 1]} : vector<6x18x128xbf16> to vector<4x16x128xbf16>
    %30 = vector.extract_strided_slice %21 {offsets = [2, 2, 0], sizes = [4, 16, 128], strides = [1, 1, 1]} : vector<6x18x128xbf16> to vector<4x16x128xbf16>
    %31 = tpu.concatenate %22, %23, %24, %25, %26, %27, %28, %29, %30 in 2 : vector<4x16x128xbf16>, vector<4x16x128xbf16>, vector<4x16x128xbf16>, vector<4x16x128xbf16>, vector<4x16x128xbf16>, vector<4x16x128xbf16>, vector<4x16x128xbf16>, vector<4x16x128xbf16>, vector<4x16x128xbf16> -> vector<4x16x1152xbf16>
    %32 = vector.shape_cast %31 : vector<4x16x1152xbf16> to vector<64x1152xbf16>
    %c0_11 = arith.constant 0 : index
    %c0_12 = arith.constant 0 : index
    %33 = vector.load %arg3[%c0_11, %c0_12] : memref<1152x128xbf16, #tpu.memory_space<vmem>>, vector<1152x128xbf16>
    %cst_13 = arith.constant dense<0.000000e+00> : vector<64x128xf32>
    %34 = tpu.matmul %32, %33, %cst_13 {dimension_numbers = #tpu.dot_dimension_numbers<[1], [0], [0], [1], [0, 0, 1, 1], [], []>} : vector<64x1152xbf16>, vector<1152x128xbf16>, vector<64x128xf32> -> vector<64x128xf32>
    %cst_14 = arith.constant 2.000000e-01 : f32
    %35 = vector.broadcast %cst_14 : f32 to vector<64x128xf32>
    %36 = arith.mulf %35, %34 : vector<64x128xf32>
    %37 = arith.maximumf %34, %36 : vector<64x128xf32>
    %38 = arith.truncf %37 : vector<64x128xf32> to vector<64x128xbf16>
    %39 = vector.shape_cast %38 : vector<64x128xbf16> to vector<4x16x128xbf16>
    %cst_15 = arith.constant 0.000000e+00 : bf16
    %40 = vector.broadcast %cst_15 : bf16 to vector<4x1x128xbf16>
    %41 = tpu.concatenate %40, %39, %40 in 1 : vector<4x1x128xbf16>, vector<4x16x128xbf16>, vector<4x1x128xbf16> -> vector<4x18x128xbf16>
    %42 = vector.shape_cast %41 : vector<4x18x128xbf16> to vector<1x4x18x128xbf16>
    %c0_16 = arith.constant 0 : index
    %c0_17 = arith.constant 0 : index
    %c0_18 = arith.constant 0 : index
    %c0_19 = arith.constant 0 : index
    %43 = vector.load %arg4[%c0_16, %c0_17, %c0_18, %c0_19] : memref<1x4x18x128xbf16, #tpu.memory_space<vmem>>, vector<1x4x18x128xbf16>
    tpu.vector_store %arg4[%c0_16, %c0_17, %c0_18, %c0_19], %42 {strides = array<i32>} : memref<1x4x18x128xbf16, #tpu.memory_space<vmem>>, vector<1x4x18x128xbf16>,
    %c0_i32_20 = arith.constant 0 : i32
    %44 = arith.cmpi eq, %arg1, %c0_i32_20 : i32
    %45 = arith.extui %44 : i1 to i32
    %c0_i32_21 = arith.constant 0 : i32
    %46 = arith.cmpi ne, %45, %c0_i32_21 : i32
    scf.if %46 {
      %cst_29 = arith.constant 0.000000e+00 : f32
      %53 = vector.broadcast %cst_29 : f32 to vector<1x1x128xf32>
      %c0_30 = arith.constant 0 : index
      %c0_31 = arith.constant 0 : index
      %c0_32 = arith.constant 0 : index
      %54 = vector.load %arg5[%c0_30, %c0_31, %c0_32] : memref<1x1x128xf32, #tpu.memory_space<vmem>>, vector<1x1x128xf32>
      tpu.vector_store %arg5[%c0_30, %c0_31, %c0_32], %53 {strides = array<i32>} : memref<1x1x128xf32, #tpu.memory_space<vmem>>, vector<1x1x128xf32>,
    } else {
    }
    %c0_22 = arith.constant 0 : index
    %c0_23 = arith.constant 0 : index
    %c0_24 = arith.constant 0 : index
    %47 = vector.load %arg5[%c0_22, %c0_23, %c0_24] : memref<1x1x128xf32, #tpu.memory_space<vmem>>, vector<1x1x128xf32>
    %48 = arith.extf %39 : vector<4x16x128xbf16> to vector<4x16x128xf32>
    %cst_25 = arith.constant dense<0.000000e+00> : vector<128xf32>
    %49 = vector.multi_reduction <add>, %48, %cst_25 [0, 1] : vector<4x16x128xf32> to vector<128xf32>
    %50 = vector.shape_cast %49 : vector<128xf32> to vector<1x1x128xf32>
    %51 = arith.addf %47, %50 : vector<1x1x128xf32>
    %c0_26 = arith.constant 0 : index
    %c0_27 = arith.constant 0 : index
    %c0_28 = arith.constant 0 : index
    %52 = vector.load %arg5[%c0_26, %c0_27, %c0_28] : memref<1x1x128xf32, #tpu.memory_space<vmem>>, vector<1x1x128xf32>
    tpu.vector_store %arg5[%c0_26, %c0_27, %c0_28], %51 {strides = array<i32>} : memref<1x1x128xf32, #tpu.memory_space<vmem>>, vector<1x1x128xf32>,
    return
  }
  func.func @transform_0(%arg0: i32, %arg1: i32) -> (i32, i32, i32, i32) {
    %c0_i32 = arith.constant 0 : i32
    %c0_i32_0 = arith.constant 0 : i32
    %c0_i32_1 = arith.constant 0 : i32
    %c0_i32_2 = arith.constant 0 : i32
    return %arg0, %c0_i32, %c0_i32_0, %c0_i32_1 : i32, i32, i32, i32
  }
  func.func @transform_1(%arg0: i32, %arg1: i32) -> (i32, i32) {
    %c0_i32 = arith.constant 0 : i32
    %c0_i32_0 = arith.constant 0 : i32
    %c0_i32_1 = arith.constant 0 : i32
    return %c0_i32, %c0_i32_0 : i32, i32
  }
  func.func @transform_2(%arg0: i32, %arg1: i32) -> (i32, i32, i32, i32) {
    %c0_i32 = arith.constant 0 : i32
    %c0_i32_0 = arith.constant 0 : i32
    %c0_i32_1 = arith.constant 0 : i32
    return %arg0, %arg1, %c0_i32, %c0_i32_0 : i32, i32, i32, i32
  }
  func.func @transform_3(%arg0: i32, %arg1: i32) -> (i32, i32, i32) {
    %c0_i32 = arith.constant 0 : i32
    %c0_i32_0 = arith.constant 0 : i32
    %c0_i32_1 = arith.constant 0 : i32
    return %arg0, %c0_i32, %c0_i32_0 : i32, i32, i32
  }
}

</mosaic_0001>

<llo_original>
// kernel: tpu_custom_call.1
$region0: #{tpu_custom_call.1}
  #allocation0 [shape = 'u32[]', space=smem, size = 0x4, offset = 0x4, fixed_abs, tag = 'smem constant byte address 0x4 - core index']
  #allocation1 [shape = 'u32[144,128]{1,0:T(1,128)}', space=vmem, size = 0x12000, scoped, tag = 'internal scratch']
  %s0 = inlined_call_operand.vmem [shape: bf16[2,16,18,128], index: 0, kind: input, shape index: {}]
  %s1 = inlined_call_operand.vmem [shape: bf16[1152,128], index: 1, kind: input, shape index: {}]
  %s2 = inlined_call_operand.vmem [shape: bf16[2,16,18,128], index: 2, kind: output, shape index: {0}]
  %s3 = inlined_call_operand.hbm [shape: f32[2,1,128], index: 3, kind: output, shape index: {1}]
  %4 = xla_tuple %s2, %s3
  %s5 = sld [smem:[#allocation0]]
  $region53: #{tpu_custom_call.1} parent=0
    _
  %s7 = ssub.s32 1, %s5
  %s8 = scalar_select 0, %s7, %s5
  $region1: #{tpu_custom_call.1} parent=0
    #allocation2 [shape = 'u8[1024]{0}', space=vmem, size = 0x400, scoped, tag = 'output window, operand 1']
    #allocation3 [shape = 's32[2]{0}', space=sflag, size = 0x8, scoped, tag = 'scoped memory for tpu_custom_call.1']
    %9 = vsyncpa [#allocation3], 0
    %s10 = scalar_lea.sflag [#allocation3], 1
    %11 = vsyncpa %s10, 0
    loop: start=0, step=1, limit=10
    $region2: #{tpu_custom_call.1} parent=1 // loop_pre_header
      _
    $region3: #{tpu_custom_call.1} parent=1 // loop_header
      %s13 = sphi 0, %s17
      %p14 = scmp.ge.s32.totalorder %s13, 10
      %s20 = sphi 0, %s32
      %s21 = sphi 0, %s28
      %s22 = sphi 0, %s20
      %s23 = sphi 0, %s21
      %s24 = sphi 0, %s22
      %s25 = sphi 0, %s23
      %s35 = sphi 0, %s37
      %s38 = sphi 0, %s35
      %s39 = sphi 0, %s38
      %s55 = sphi 0, %s39
      %s59 = sphi 0, %s59
      %s61 = sphi 0, %s59
      %s62 = sphi 0, %s61
      %s76 = sphi 0, %s62
      %s84 = sphi 0, %s86
      %s87 = sphi 0, %s84
      %s88 = sphi 0, %s87
      %s104 = sphi 0, %s88
      %s110 = sphi 0, %s112
      %s113 = sphi 0, %s110
      %s114 = sphi 0, %s113
      %s130 = sphi 0, %s114
    $region4: #{tpu_custom_call.1} parent=1 // loop_header_branch
      %16 = sbr.rel (%p14) target = $region8
    $region5: #{tpu_custom_call.1} parent=1 // loop_body
      %s18 = ssub.s32 %s13, 1
      %s19 = ssub.s32 %s13, 2
      %s26 = sadd.s32 1, %s21
      %p27 = scmp.ge.s32.totalorder %s26, 4
      %s28 = scalar_select %p27, 0, %s26
      %s29 = sadd.s32 1, %s20
      %s30 = scalar_select %p27, %s29, %s20
      %p31 = scmp.ge.s32.totalorder %s30, 2
      %s32 = scalar_select %p31, 0, %s30
      %s33 = ssub.s32 %s20, %s32
      %p34 = scmp.eq.s32.totalorder %s33, 0
      %s36 = sadd.s32 %s35, 1
      %s37 = scalar_select %p34, %s35, %s36
      %p40 = pneg %p34
      %p41 = scmp.eq.s32.totalorder %s13, 7
      %p42 = por %p40, %p41
      %p43 = scmp.ne.s32.totalorder %s35, %s38
      %p44 = scmp.eq.s32.totalorder %s13, 0
      %p45 = por %p43, %p44
      %p46 = scmp.ne.s32.totalorder %s35, %s38
      %p47 = scmp.eq.s32.totalorder %s18, 7
      %p48 = por %p46, %p47
      %p49 = scmp.ne.s32.totalorder %s38, %s39
      %p50 = scmp.eq.s32.totalorder %s18, 0
      %p51 = por %p49, %p50
      %p52 = scmp.ne.s32.totalorder %s38, %s39
      %p53 = scmp.eq.s32.totalorder %s19, 7
      %p54 = por %p52, %p53
      %p56 = scmp.ne.s32.totalorder %s39, %s55
      %p57 = scmp.eq.s32.totalorder %s19, 0
      %p58 = por %p56, %p57
      %s60 = sadd.s32 %s59, 1
      %p63 = scmp.eq.s32.totalorder %s13, 7
      %p64 = scmp.ne.s32.totalorder %s59, %s61
      %p65 = scmp.eq.s32.totalorder %s13, 0
      %p66 = por %p64, %p65
      %p67 = scmp.ne.s32.totalorder %s59, %s61
      %p68 = scmp.eq.s32.totalorder %s18, 7
      %p69 = por %p67, %p68
      %p70 = scmp.ne.s32.totalorder %s61, %s62
      %p71 = scmp.eq.s32.totalorder %s18, 0
      %p72 = por %p70, %p71
      %p73 = scmp.ne.s32.totalorder %s61, %s62
      %p74 = scmp.eq.s32.totalorder %s19, 7
      %p75 = por %p73, %p74
      %p77 = scmp.ne.s32.totalorder %s62, %s76
      %p78 = scmp.eq.s32.totalorder %s19, 0
      %p79 = por %p77, %p78
      %s80 = ssub.s32 %s20, %s32
      %s81 = ssub.s32 %s21, %s28
      %s82 = sor.u32 %s80, %s81
      %p83 = scmp.eq.s32.totalorder %s82, 0
      %s85 = sadd.s32 %s84, 1
      %s86 = scalar_select %p83, %s84, %s85
      %p89 = pneg %p83
      %p90 = scmp.eq.s32.totalorder %s13, 7
      %p91 = por %p89, %p90
      %p92 = scmp.ne.s32.totalorder %s84, %s87
      %p93 = scmp.eq.s32.totalorder %s13, 0
      %p94 = por %p92, %p93
      %p95 = scmp.ne.s32.totalorder %s84, %s87
      %p96 = scmp.eq.s32.totalorder %s18, 7
      %p97 = por %p95, %p96
      %p98 = scmp.ne.s32.totalorder %s87, %s88
      %p99 = scmp.eq.s32.totalorder %s18, 0
      %p100 = por %p98, %p99
      %p101 = scmp.ne.s32.totalorder %s87, %s88
      %p102 = scmp.eq.s32.totalorder %s19, 7
      %p103 = por %p101, %p102
      %p105 = scmp.ne.s32.totalorder %s88, %s104
      %p106 = scmp.eq.s32.totalorder %s19, 0
      %p107 = por %p105, %p106
      %s108 = ssub.s32 %s20, %s32
      %p109 = scmp.eq.s32.totalorder %s108, 0
      %s111 = sadd.s32 %s110, 1
      %s112 = scalar_select %p109, %s110, %s111
      %p115 = pneg %p109
      %p116 = scmp.eq.s32.totalorder %s13, 7
      %p117 = por %p115, %p116
      %p118 = scmp.ne.s32.totalorder %s110, %s113
      %p119 = scmp.eq.s32.totalorder %s13, 0
      %p120 = por %p118, %p119
      %p121 = scmp.ne.s32.totalorder %s110, %s113
      %p122 = scmp.eq.s32.totalorder %s18, 7
      %p123 = por %p121, %p122
      %p124 = scmp.ne.s32.totalorder %s113, %s114
      %p125 = scmp.eq.s32.totalorder %s18, 0
      %p126 = por %p124, %p125
      %p127 = scmp.ne.s32.totalorder %s113, %s114
      %p128 = scmp.eq.s32.totalorder %s19, 7
      %p129 = por %p127, %p128
      %p131 = scmp.ne.s32.totalorder %s114, %s130
      %p132 = scmp.eq.s32.totalorder %s19, 0
      %p133 = por %p131, %p132
      %p134 = scmp.le.s32.totalorder 1, %s13
      %p135 = scmp.lt.s32.totalorder %s13, 9
      %p136 = pnand %p134, %p135
      %p137 = pneg %p136
      // Predicated region
      $region9: #{tpu_custom_call.1} parent=5 // pred_check
        _
      $region10: #{tpu_custom_call.1} parent=5 // pred_check_branch
        %139 = sbr.rel (%p136) target = $region12
      $region11: #{tpu_custom_call.1} parent=5 // pred_region
        %s140 = ssub.s32 %s13, 1
        // Predicated region
        $region13: #{tpu_custom_call.1} parent=11 // pred_check
          %p141 = pneg %p72
        $region14: #{tpu_custom_call.1} parent=11 // pred_check_branch
          %143 = sbr.rel (%p141) target = $region16
        $region15: #{tpu_custom_call.1} parent=11 // pred_region
          _
        $region16: #{tpu_custom_call.1} parent=11 // pred_fallthru
          _
      $region12: #{tpu_custom_call.1} parent=5 // pred_fallthru
        _
      %p144 = scmp.lt.s32.totalorder %s13, 8
      // Predicated region
      $region17: #{tpu_custom_call.1} parent=5 // pred_check
        %p145 = pneg %p144
      $region18: #{tpu_custom_call.1} parent=5 // pred_check_branch
        %147 = sbr.rel (%p145) target = $region20
      $region19: #{tpu_custom_call.1} parent=5 // pred_region
        // Predicated region
        $region21: #{tpu_custom_call.1} parent=19 // pred_check
          %p148 = pneg %p45
        $region22: #{tpu_custom_call.1} parent=19 // pred_check_branch
          %150 = sbr.rel (%p148) target = $region24
        $region23: #{tpu_custom_call.1} parent=19 // pred_region
          %p151 = scmp.lt.s32.totalorder %s20, 1
          %s152 = scalar_select %p151, %s20, 1
          %s153 = smul.addr %s152, 48
          %s154 = smul.addr %s153, 4
          %s155 = scalar_lea.vmem %s0, %s154
        $region24: #{tpu_custom_call.1} parent=19 // pred_fallthru
          _
      $region20: #{tpu_custom_call.1} parent=5 // pred_fallthru
        _
      %p156 = scmp.le.s32.totalorder 1, %s13
      %p157 = scmp.lt.s32.totalorder %s13, 9
      %p158 = pnand %p156, %p157
      %p159 = pneg %p158
      // Predicated region
      $region25: #{tpu_custom_call.1} parent=5 // pred_check
        _
      $region26: #{tpu_custom_call.1} parent=5 // pred_check_branch
        %161 = sbr.rel (%p158) target = $region28
      $region27: #{tpu_custom_call.1} parent=5 // pred_region
        %s162 = ssub.s32 %s13, 1
        %p163 = scmp.lt.s32.totalorder %s22, 1
        %s164 = scalar_select %p163, %s22, 1
        %s165 = smul.addr %s164, 48
        %s166 = smul.addr %s165, 4
        %s167 = scalar_lea.vmem %s0, %s166
        %p168 = pneg %p51
        %p169 = pneg %p48
        %p170 = pneg %p72
        %p171 = pneg %p69
        %p172 = pneg %p100
        %p173 = pneg %p97
        %s174 = smul.u32 4, %s23
        %p175 = scmp.lt.s32.totalorder %s22, 1
        %s176 = scalar_select %p175, %s22, 1
        %p177 = scmp.lt.s32.totalorder %s174, 15
        %s178 = scalar_select %p177, %s174, 15
        %s179 = smul.addr %s178, 3
        %s180 = smul.addr %s176, 48
        %s181 = sadd.s32 %s179, %s180
        %s182 = smul.addr %s181, 4
        %s183 = scalar_lea.vmem %s2, %s182
        %p184 = pneg %p126
        %p185 = pneg %p123
        %s186 = sand.u32 %s113, 1
        %s187 = scalar_lea.sflag [#allocation3], %s186
        %s188 = sand.u32 %s113, 1
        %s189 = scalar_lea.vmem [#allocation2], %s188
        %p190 = scmp.lt.s32.totalorder %s22, 1
        %s191 = scalar_select %p190, %s22, 1
        %s192 = smul.addr %s191, 48
        %s193 = smul.addr %s192, 4
        %s194 = scalar_lea.vmem %s0, %s193
        %s195 = smul.u32 4, %s23
        %p196 = scmp.lt.s32.totalorder %s22, 1
        %s197 = scalar_select %p196, %s22, 1
        %p198 = scmp.lt.s32.totalorder %s195, 15
        %s199 = scalar_select %p198, %s195, 15
        %s200 = smul.addr %s199, 3
        %s201 = smul.addr %s197, 48
        %s202 = sadd.s32 %s200, %s201
        %s203 = smul.addr %s202, 4
        %s204 = scalar_lea.vmem %s2, %s203
        %s205 = smul.u32 4, %s23
        %s207 = smul.u32 %s23, 4
        %s208 = smul.u32 %s207, 3
        %s209 = smul.addr %s208, 4
        %s210 = scalar_lea.vmem %s194, %s209
        %v211 = vld [vmem:[%s210] sm:$0xf]
        %v212 = vld [vmem:[%s210 + $0x4] sm:$0xf]
        %v213 = vld [vmem:[%s210 + $0x8] sm:$0x1]
        %v214 = vld [vmem:[%s210 + $0xc] sm:$0xf]
        %v215 = vld [vmem:[%s210 + $0x10] sm:$0xf]
        %v216 = vld [vmem:[%s210 + $0x14] sm:$0x1]
        %v217 = vld [vmem:[%s210 + $0x18] sm:$0xf]
        %v218 = vld [vmem:[%s210 + $0x1c] sm:$0xf]
        %v219 = vld [vmem:[%s210 + $0x20] sm:$0x1]
        %v220 = vld [vmem:[%s210 + $0x24] sm:$0xf]
        %v221 = vld [vmem:[%s210 + $0x28] sm:$0xf]
        %v222 = vld [vmem:[%s210 + $0x2c] sm:$0x1]
        %s223 = ssub.s32 %s207, 1
        %p224 = scmp.gt.s32.totalorder %s223, 0
        %s225 = scalar_select %p224, %s223, 0
        %s226 = smul.u32 %s225, 3
        %s227 = smul.addr %s226, 4
        %s228 = scalar_lea.vmem %s194, %s227
        %v229 = vld [vmem:[%s228] sm:$0xf]
        %v230 = vld [vmem:[%s228 + $0x4] sm:$0xf]
        %v231 = vld [vmem:[%s228 + $0x8] sm:$0x1]
        %p232 = scmp.gt.s32.totalorder %s23, 0
        %s233 = scalar_select %p232, 1, 0
        %v234 = vstv %s233
        %vm235 = vcmp.eq.s32.totalorder %v234, 1
        %v236 = vsel %vm235, %v229, 0
        %v237 = vsel %vm235, %v230, 0
        %v238 = vsel %vm235, %v231, 0
        %s239 = sadd.s32 %s207, 4
        %p240 = scmp.lt.s32.totalorder %s239, 15
        %s241 = scalar_select %p240, %s239, 15
        %s242 = smul.u32 %s241, 3
        %s243 = smul.addr %s242, 4
        %s244 = scalar_lea.vmem %s194, %s243
        %v245 = vld [vmem:[%s244] sm:$0xf]
        %v246 = vld [vmem:[%s244 + $0x4] sm:$0xf]
        %v247 = vld [vmem:[%s244 + $0x8] sm:$0x1]
        %p248 = scmp.lt.s32.totalorder %s23, 3
        %s249 = scalar_select %p248, 1, 0
        %v250 = vstv %s249
        %vm251 = vcmp.eq.s32.totalorder %v250, 1
        %v252 = vsel %vm251, %v245, 0
        %v253 = vsel %vm251, %v246, 0
        %v254 = vsel %vm251, %v247, 0
        %v263 = vunpack.c.l.b16 %v236
        %v264 = vunpack.c.l.b16 %v237
        %v265 = vunpack.c.l.b16 %v211
        %v266 = vunpack.c.l.b16 %v212
        %v267 = vunpack.c.l.b16 %v214
        %v268 = vunpack.c.l.b16 %v215
        %v269 = vunpack.c.l.b16 %v217
        %v270 = vunpack.c.l.b16 %v218
        %v271 = vpack.c.b16 %v264, %v263
        %v272 = vpack.c.b16 %v266, %v265
        %v273 = vpack.c.b16 %v268, %v267
        %v274 = vpack.c.b16 %v270, %v269
        %v283 = vunpack.c.l.b16 %v238
        %v284 = vunpack.c.l.b16 %v213
        %v285 = vunpack.c.l.b16 %v216
        %v286 = vunpack.c.l.b16 %v219
        %v287 = vpack.c.b16 %v283, %v283
        %v288 = vpack.c.b16 %v284, %v284
        %v289 = vpack.c.b16 %v285, %v285
        %v290 = vpack.c.b16 %v286, %v286
        %vm291 = vsmask.f32 7424
        %v293 = vshrl.u32 %v271, 16
        %v295 = vshll.u32 %v271, 16
        %v297 = vrot.slane %v295, 1
        %v298 = vor.u32 %v293, %v297
        %v300 = vshll.u32 %v287, 16
        %v302 = vrot.slane %v300, 1
        %v303 = vsel %vm291, %v298, %v302
        %v305 = vshrl.u32 %v272, 16
        %v307 = vshll.u32 %v272, 16
        %v309 = vrot.slane %v307, 1
        %v310 = vor.u32 %v305, %v309
        %v312 = vshll.u32 %v288, 16
        %v314 = vrot.slane %v312, 1
        %v315 = vsel %vm291, %v310, %v314
        %v317 = vshrl.u32 %v273, 16
        %v319 = vshll.u32 %v273, 16
        %v321 = vrot.slane %v319, 1
        %v322 = vor.u32 %v317, %v321
        %v324 = vshll.u32 %v289, 16
        %v326 = vrot.slane %v324, 1
        %v327 = vsel %vm291, %v322, %v326
        %v329 = vshrl.u32 %v274, 16
        %v331 = vshll.u32 %v274, 16
        %v333 = vrot.slane %v331, 1
        %v334 = vor.u32 %v329, %v333
        %v336 = vshll.u32 %v290, 16
        %v338 = vrot.slane %v336, 1
        %v339 = vsel %vm291, %v334, %v338
        %vm344 = vcmask 1046528
        %v345 = vrot.slane %v271, 1
        %v346 = vrot.slane %v287, 1
        %v347 = vsel %vm344, %v345, %v346
        %v348 = vrot.slane %v272, 1
        %v349 = vrot.slane %v288, 1
        %v350 = vsel %vm344, %v348, %v349
        %v351 = vrot.slane %v273, 1
        %v352 = vrot.slane %v289, 1
        %v353 = vsel %vm344, %v351, %v352
        %v354 = vrot.slane %v274, 1
        %v355 = vrot.slane %v290, 1
        %v356 = vsel %vm344, %v354, %v355
        %v363 = vunpack.c.l.b16 %v220
        %v364 = vunpack.c.l.b16 %v221
        %v365 = vpack.c.b16 %v364, %v363
        %v368 = vunpack.c.l.b16 %v222
        %v369 = vpack.c.b16 %v368, %v368
        %v371 = vshrl.u32 %v365, 16
        %v373 = vshll.u32 %v365, 16
        %v375 = vrot.slane %v373, 1
        %v376 = vor.u32 %v371, %v375
        %v378 = vshll.u32 %v369, 16
        %v380 = vrot.slane %v378, 1
        %v381 = vsel %vm291, %v376, %v380
        %v383 = vrot.slane %v365, 1
        %v384 = vrot.slane %v369, 1
        %v385 = vsel %vm344, %v383, %v384
        %v389 = vunpack.c.l.b16 %v252
        %v390 = vunpack.c.l.b16 %v253
        %v391 = vpack.c.b16 %v390, %v389
        %v394 = vunpack.c.l.b16 %v254
        %v395 = vpack.c.b16 %v394, %v394
        %v397 = vshrl.u32 %v391, 16
        %v399 = vshll.u32 %v391, 16
        %v401 = vrot.slane %v399, 1
        %v402 = vor.u32 %v397, %v401
        %v404 = vshll.u32 %v395, 16
        %v406 = vrot.slane %v404, 1
        %v407 = vsel %vm291, %v402, %v406
        %v409 = vrot.slane %v391, 1
        %v410 = vrot.slane %v395, 1
        %v411 = vsel %vm344, %v409, %v410
        %v413 = vld [vmem:[%s1] sm:$0xf]
        %v414 = vld [vmem:[%s1 + $0x4] sm:$0xf]
        %v415 = vld [vmem:[%s1 + $0x8] sm:$0xf]
        %v416 = vld [vmem:[%s1 + $0xc] sm:$0xf]
        %v417 = vld [vmem:[%s1 + $0x10] sm:$0xf]
        %v418 = vld [vmem:[%s1 + $0x14] sm:$0xf]
        %v419 = vld [vmem:[%s1 + $0x18] sm:$0xf]
        %v420 = vld [vmem:[%s1 + $0x1c] sm:$0xf]
        %v421 = vld [vmem:[%s1 + $0x20] sm:$0xf]
        %v422 = vld [vmem:[%s1 + $0x24] sm:$0xf]
        %v423 = vld [vmem:[%s1 + $0x28] sm:$0xf]
        %v424 = vld [vmem:[%s1 + $0x2c] sm:$0xf]
        %v425 = vld [vmem:[%s1 + $0x30] sm:$0xf]
        %v426 = vld [vmem:[%s1 + $0x34] sm:$0xf]
        %v427 = vld [vmem:[%s1 + $0x38] sm:$0xf]
        %v428 = vld [vmem:[%s1 + $0x3c] sm:$0xf]
        %v429 = vld [vmem:[%s1 + $0x40] sm:$0xf]
        %v430 = vld [vmem:[%s1 + $0x44] sm:$0xf]
        %v431 = vld [vmem:[%s1 + $0x48] sm:$0xf]
        %v432 = vld [vmem:[%s1 + $0x4c] sm:$0xf]
        %v433 = vld [vmem:[%s1 + $0x50] sm:$0xf]
        %v434 = vld [vmem:[%s1 + $0x54] sm:$0xf]
        %v435 = vld [vmem:[%s1 + $0x58] sm:$0xf]
        %v436 = vld [vmem:[%s1 + $0x5c] sm:$0xf]
        %v437 = vld [vmem:[%s1 + $0x60] sm:$0xf]
        %v438 = vld [vmem:[%s1 + $0x64] sm:$0xf]
        %v439 = vld [vmem:[%s1 + $0x68] sm:$0xf]
        %v440 = vld [vmem:[%s1 + $0x6c] sm:$0xf]
        %v441 = vld [vmem:[%s1 + $0x70] sm:$0xf]
        %v442 = vld [vmem:[%s1 + $0x74] sm:$0xf]
        %v443 = vld [vmem:[%s1 + $0x78] sm:$0xf]
        %v444 = vld [vmem:[%s1 + $0x7c] sm:$0xf]
        %v445 = vld [vmem:[%s1 + $0x80] sm:$0xf]
        %v446 = vld [vmem:[%s1 + $0x84] sm:$0xf]
        %v447 = vld [vmem:[%s1 + $0x88] sm:$0xf]
        %v448 = vld [vmem:[%s1 + $0x8c] sm:$0xf]
        %v449 = vld [vmem:[%s1 + $0x90] sm:$0xf]
        %v450 = vld [vmem:[%s1 + $0x94] sm:$0xf]
        %v451 = vld [vmem:[%s1 + $0x98] sm:$0xf]
        %v452 = vld [vmem:[%s1 + $0x9c] sm:$0xf]
        %v453 = vld [vmem:[%s1 + $0xa0] sm:$0xf]
        %v454 = vld [vmem:[%s1 + $0xa4] sm:$0xf]
        %v455 = vld [vmem:[%s1 + $0xa8] sm:$0xf]
        %v456 = vld [vmem:[%s1 + $0xac] sm:$0xf]
        %v457 = vld [vmem:[%s1 + $0xb0] sm:$0xf]
        %v458 = vld [vmem:[%s1 + $0xb4] sm:$0xf]
        %v459 = vld [vmem:[%s1 + $0xb8] sm:$0xf]
        %v460 = vld [vmem:[%s1 + $0xbc] sm:$0xf]
        %v461 = vld [vmem:[%s1 + $0xc0] sm:$0xf]
        %v462 = vld [vmem:[%s1 + $0xc4] sm:$0xf]
        %v463 = vld [vmem:[%s1 + $0xc8] sm:$0xf]
        %v464 = vld [vmem:[%s1 + $0xcc] sm:$0xf]
        %v465 = vld [vmem:[%s1 + $0xd0] sm:$0xf]
        %v466 = vld [vmem:[%s1 + $0xd4] sm:$0xf]
        %v467 = vld [vmem:[%s1 + $0xd8] sm:$0xf]
        %v468 = vld [vmem:[%s1 + $0xdc] sm:$0xf]
        %v469 = vld [vmem:[%s1 + $0xe0] sm:$0xf]
        %v470 = vld [vmem:[%s1 + $0xe4] sm:$0xf]
        %v471 = vld [vmem:[%s1 + $0xe8] sm:$0xf]
        %v472 = vld [vmem:[%s1 + $0xec] sm:$0xf]
        %v473 = vld [vmem:[%s1 + $0xf0] sm:$0xf]
        %v474 = vld [vmem:[%s1 + $0xf4] sm:$0xf]
        %v475 = vld [vmem:[%s1 + $0xf8] sm:$0xf]
        %v476 = vld [vmem:[%s1 + $0xfc] sm:$0xf]
        %v477 = vld [vmem:[%s1 + $0x100] sm:$0xf]
        %v478 = vld [vmem:[%s1 + $0x104] sm:$0xf]
        %v479 = vld [vmem:[%s1 + $0x108] sm:$0xf]
        %v480 = vld [vmem:[%s1 + $0x10c] sm:$0xf]
        %v481 = vld [vmem:[%s1 + $0x110] sm:$0xf]
        %v482 = vld [vmem:[%s1 + $0x114] sm:$0xf]
        %v483 = vld [vmem:[%s1 + $0x118] sm:$0xf]
        %v484 = vld [vmem:[%s1 + $0x11c] sm:$0xf]
        %v485 = vld [vmem:[%s1 + $0x120] sm:$0xf]
        %v486 = vld [vmem:[%s1 + $0x124] sm:$0xf]
        %v487 = vld [vmem:[%s1 + $0x128] sm:$0xf]
        %v488 = vld [vmem:[%s1 + $0x12c] sm:$0xf]
        %v489 = vld [vmem:[%s1 + $0x130] sm:$0xf]
        %v490 = vld [vmem:[%s1 + $0x134] sm:$0xf]
        %v491 = vld [vmem:[%s1 + $0x138] sm:$0xf]
        %v492 = vld [vmem:[%s1 + $0x13c] sm:$0xf]
        %v493 = vld [vmem:[%s1 + $0x140] sm:$0xf]
        %v494 = vld [vmem:[%s1 + $0x144] sm:$0xf]
        %v495 = vld [vmem:[%s1 + $0x148] sm:$0xf]
        %v496 = vld [vmem:[%s1 + $0x14c] sm:$0xf]
        %v497 = vld [vmem:[%s1 + $0x150] sm:$0xf]
        %v498 = vld [vmem:[%s1 + $0x154] sm:$0xf]
        %v499 = vld [vmem:[%s1 + $0x158] sm:$0xf]
        %v500 = vld [vmem:[%s1 + $0x15c] sm:$0xf]
        %v501 = vld [vmem:[%s1 + $0x160] sm:$0xf]
        %v502 = vld [vmem:[%s1 + $0x164] sm:$0xf]
        %v503 = vld [vmem:[%s1 + $0x168] sm:$0xf]
        %v504 = vld [vmem:[%s1 + $0x16c] sm:$0xf]
        %v505 = vld [vmem:[%s1 + $0x170] sm:$0xf]
        %v506 = vld [vmem:[%s1 + $0x174] sm:$0xf]
        %v507 = vld [vmem:[%s1 + $0x178] sm:$0xf]
        %v508 = vld [vmem:[%s1 + $0x17c] sm:$0xf]
        %v509 = vld [vmem:[%s1 + $0x180] sm:$0xf]
        %v510 = vld [vmem:[%s1 + $0x184] sm:$0xf]
        %v511 = vld [vmem:[%s1 + $0x188] sm:$0xf]
        %v512 = vld [vmem:[%s1 + $0x18c] sm:$0xf]
        %v513 = vld [vmem:[%s1 + $0x190] sm:$0xf]
        %v514 = vld [vmem:[%s1 + $0x194] sm:$0xf]
        %v515 = vld [vmem:[%s1 + $0x198] sm:$0xf]
        %v516 = vld [vmem:[%s1 + $0x19c] sm:$0xf]
        %v517 = vld [vmem:[%s1 + $0x1a0] sm:$0xf]
        %v518 = vld [vmem:[%s1 + $0x1a4] sm:$0xf]
        %v519 = vld [vmem:[%s1 + $0x1a8] sm:$0xf]
        %v520 = vld [vmem:[%s1 + $0x1ac] sm:$0xf]
        %v521 = vld [vmem:[%s1 + $0x1b0] sm:$0xf]
        %v522 = vld [vmem:[%s1 + $0x1b4] sm:$0xf]
        %v523 = vld [vmem:[%s1 + $0x1b8] sm:$0xf]
        %v524 = vld [vmem:[%s1 + $0x1bc] sm:$0xf]
        %v525 = vld [vmem:[%s1 + $0x1c0] sm:$0xf]
        %v526 = vld [vmem:[%s1 + $0x1c4] sm:$0xf]
        %v527 = vld [vmem:[%s1 + $0x1c8] sm:$0xf]
        %v528 = vld [vmem:[%s1 + $0x1cc] sm:$0xf]
        %v529 = vld [vmem:[%s1 + $0x1d0] sm:$0xf]
        %v530 = vld [vmem:[%s1 + $0x1d4] sm:$0xf]
        %v531 = vld [vmem:[%s1 + $0x1d8] sm:$0xf]
        %v532 = vld [vmem:[%s1 + $0x1dc] sm:$0xf]
        %v533 = vld [vmem:[%s1 + $0x1e0] sm:$0xf]
        %v534 = vld [vmem:[%s1 + $0x1e4] sm:$0xf]
        %v535 = vld [vmem:[%s1 + $0x1e8] sm:$0xf]
        %v536 = vld [vmem:[%s1 + $0x1ec] sm:$0xf]
        %v537 = vld [vmem:[%s1 + $0x1f0] sm:$0xf]
        %v538 = vld [vmem:[%s1 + $0x1f4] sm:$0xf]
        %v539 = vld [vmem:[%s1 + $0x1f8] sm:$0xf]
        %v540 = vld [vmem:[%s1 + $0x1fc] sm:$0xf]
        %v541 = vld [vmem:[%s1 + $0x200] sm:$0xf]
        %v542 = vld [vmem:[%s1 + $0x204] sm:$0xf]
        %v543 = vld [vmem:[%s1 + $0x208] sm:$0xf]
        %v544 = vld [vmem:[%s1 + $0x20c] sm:$0xf]
        %v545 = vld [vmem:[%s1 + $0x210] sm:$0xf]
        %v546 = vld [vmem:[%s1 + $0x214] sm:$0xf]
        %v547 = vld [vmem:[%s1 + $0x218] sm:$0xf]
        %v548 = vld [vmem:[%s1 + $0x21c] sm:$0xf]
        %v549 = vld [vmem:[%s1 + $0x220] sm:$0xf]
        %v550 = vld [vmem:[%s1 + $0x224] sm:$0xf]
        %v551 = vld [vmem:[%s1 + $0x228] sm:$0xf]
        %v552 = vld [vmem:[%s1 + $0x22c] sm:$0xf]
        %v553 = vld [vmem:[%s1 + $0x230] sm:$0xf]
        %v554 = vld [vmem:[%s1 + $0x234] sm:$0xf]
        %v555 = vld [vmem:[%s1 + $0x238] sm:$0xf]
        %v556 = vld [vmem:[%s1 + $0x23c] sm:$0xf]
        %v701 = vunpack.c.l.b16 %v413
        %v702 = vunpack.c.l.b16 %v414
        %v703 = vunpack.c.l.b16 %v415
        %v704 = vunpack.c.l.b16 %v416
        %v705 = vunpack.c.l.b16 %v417
        %v706 = vunpack.c.l.b16 %v418
        %v707 = vunpack.c.l.b16 %v419
        %v708 = vunpack.c.l.b16 %v420
        %v709 = vunpack.c.l.b16 %v421
        %v710 = vunpack.c.l.b16 %v422
        %v711 = vunpack.c.l.b16 %v423
        %v712 = vunpack.c.l.b16 %v424
        %v713 = vunpack.c.l.b16 %v425
        %v714 = vunpack.c.l.b16 %v426
        %v715 = vunpack.c.l.b16 %v427
        %v716 = vunpack.c.l.b16 %v428
        %v717 = vunpack.c.l.b16 %v429
        %v718 = vunpack.c.l.b16 %v430
        %v719 = vunpack.c.l.b16 %v431
        %v720 = vunpack.c.l.b16 %v432
        %v721 = vunpack.c.l.b16 %v433
        %v722 = vunpack.c.l.b16 %v434
        %v723 = vunpack.c.l.b16 %v435
        %v724 = vunpack.c.l.b16 %v436
        %v725 = vunpack.c.l.b16 %v437
        %v726 = vunpack.c.l.b16 %v438
        %v727 = vunpack.c.l.b16 %v439
        %v728 = vunpack.c.l.b16 %v440
        %v729 = vunpack.c.l.b16 %v441
        %v730 = vunpack.c.l.b16 %v442
        %v731 = vunpack.c.l.b16 %v443
        %v732 = vunpack.c.l.b16 %v444
        %v733 = vunpack.c.l.b16 %v445
        %v734 = vunpack.c.l.b16 %v446
        %v735 = vunpack.c.l.b16 %v447
        %v736 = vunpack.c.l.b16 %v448
        %v737 = vunpack.c.l.b16 %v449
        %v738 = vunpack.c.l.b16 %v450
        %v739 = vunpack.c.l.b16 %v451
        %v740 = vunpack.c.l.b16 %v452
        %v741 = vunpack.c.l.b16 %v453
        %v742 = vunpack.c.l.b16 %v454
        %v743 = vunpack.c.l.b16 %v455
        %v744 = vunpack.c.l.b16 %v456
        %v745 = vunpack.c.l.b16 %v457
        %v746 = vunpack.c.l.b16 %v458
        %v747 = vunpack.c.l.b16 %v459
        %v748 = vunpack.c.l.b16 %v460
        %v749 = vunpack.c.l.b16 %v461
        %v750 = vunpack.c.l.b16 %v462
        %v751 = vunpack.c.l.b16 %v463
        %v752 = vunpack.c.l.b16 %v464
        %v753 = vunpack.c.l.b16 %v465
        %v754 = vunpack.c.l.b16 %v466
        %v755 = vunpack.c.l.b16 %v467
        %v756 = vunpack.c.l.b16 %v468
        %v757 = vunpack.c.l.b16 %v469
        %v758 = vunpack.c.l.b16 %v470
        %v759 = vunpack.c.l.b16 %v471
        %v760 = vunpack.c.l.b16 %v472
        %v761 = vunpack.c.l.b16 %v473
        %v762 = vunpack.c.l.b16 %v474
        %v763 = vunpack.c.l.b16 %v475
        %v764 = vunpack.c.l.b16 %v476
        %v765 = vunpack.c.l.b16 %v477
        %v766 = vunpack.c.l.b16 %v478
        %v767 = vunpack.c.l.b16 %v479
        %v768 = vunpack.c.l.b16 %v480
        %v769 = vunpack.c.l.b16 %v481
        %v770 = vunpack.c.l.b16 %v482
        %v771 = vunpack.c.l.b16 %v483
        %v772 = vunpack.c.l.b16 %v484
        %v773 = vunpack.c.l.b16 %v485
        %v774 = vunpack.c.l.b16 %v486
        %v775 = vunpack.c.l.b16 %v487
        %v776 = vunpack.c.l.b16 %v488
        %v777 = vunpack.c.l.b16 %v489
        %v778 = vunpack.c.l.b16 %v490
        %v779 = vunpack.c.l.b16 %v491
        %v780 = vunpack.c.l.b16 %v492
        %v781 = vunpack.c.l.b16 %v493
        %v782 = vunpack.c.l.b16 %v494
        %v783 = vunpack.c.l.b16 %v495
        %v784 = vunpack.c.l.b16 %v496
        %v785 = vunpack.c.l.b16 %v497
        %v786 = vunpack.c.l.b16 %v498
        %v787 = vunpack.c.l.b16 %v499
        %v788 = vunpack.c.l.b16 %v500
        %v789 = vunpack.c.l.b16 %v501
        %v790 = vunpack.c.l.b16 %v502
        %v791 = vunpack.c.l.b16 %v503
        %v792 = vunpack.c.l.b16 %v504
        %v793 = vunpack.c.l.b16 %v505
        %v794 = vunpack.c.l.b16 %v506
        %v795 = vunpack.c.l.b16 %v507
        %v796 = vunpack.c.l.b16 %v508
        %v797 = vunpack.c.l.b16 %v509
        %v798 = vunpack.c.l.b16 %v510
        %v799 = vunpack.c.l.b16 %v511
        %v800 = vunpack.c.l.b16 %v512
        %v801 = vunpack.c.l.b16 %v513
        %v802 = vunpack.c.l.b16 %v514
        %v803 = vunpack.c.l.b16 %v515
        %v804 = vunpack.c.l.b16 %v516
        %v805 = vunpack.c.l.b16 %v517
        %v806 = vunpack.c.l.b16 %v518
        %v807 = vunpack.c.l.b16 %v519
        %v808 = vunpack.c.l.b16 %v520
        %v809 = vunpack.c.l.b16 %v521
        %v810 = vunpack.c.l.b16 %v522
        %v811 = vunpack.c.l.b16 %v523
        %v812 = vunpack.c.l.b16 %v524
        %v813 = vunpack.c.l.b16 %v525
        %v814 = vunpack.c.l.b16 %v526
        %v815 = vunpack.c.l.b16 %v527
        %v816 = vunpack.c.l.b16 %v528
        %v817 = vunpack.c.l.b16 %v529
        %v818 = vunpack.c.l.b16 %v530
        %v819 = vunpack.c.l.b16 %v531
        %v820 = vunpack.c.l.b16 %v532
        %v821 = vunpack.c.l.b16 %v533
        %v822 = vunpack.c.l.b16 %v534
        %v823 = vunpack.c.l.b16 %v535
        %v824 = vunpack.c.l.b16 %v536
        %v825 = vunpack.c.l.b16 %v537
        %v826 = vunpack.c.l.b16 %v538
        %v827 = vunpack.c.l.b16 %v539
        %v828 = vunpack.c.l.b16 %v540
        %v829 = vunpack.c.l.b16 %v541
        %v830 = vunpack.c.l.b16 %v542
        %v831 = vunpack.c.l.b16 %v543
        %v832 = vunpack.c.l.b16 %v544
        %v833 = vunpack.c.l.b16 %v545
        %v834 = vunpack.c.l.b16 %v546
        %v835 = vunpack.c.l.b16 %v547
        %v836 = vunpack.c.l.b16 %v548
        %v837 = vunpack.c.l.b16 %v549
        %v838 = vunpack.c.l.b16 %v550
        %v839 = vunpack.c.l.b16 %v551
        %v840 = vunpack.c.l.b16 %v552
        %v841 = vunpack.c.l.b16 %v553
        %v842 = vunpack.c.l.b16 %v554
        %v843 = vunpack.c.l.b16 %v555
        %v844 = vunpack.c.l.b16 %v556
        %v845 = vpack.c.b16 %v702, %v701
        %v846 = vpack.c.b16 %v704, %v703
        %v847 = vpack.c.b16 %v706, %v705
        %v848 = vpack.c.b16 %v708, %v707
        %v849 = vpack.c.b16 %v710, %v709
        %v850 = vpack.c.b16 %v712, %v711
        %v851 = vpack.c.b16 %v714, %v713
        %v852 = vpack.c.b16 %v716, %v715
        %v853 = vpack.c.b16 %v718, %v717
        %v854 = vpack.c.b16 %v720, %v719
        %v855 = vpack.c.b16 %v722, %v721
        %v856 = vpack.c.b16 %v724, %v723
        %v857 = vpack.c.b16 %v726, %v725
        %v858 = vpack.c.b16 %v728, %v727
        %v859 = vpack.c.b16 %v730, %v729
        %v860 = vpack.c.b16 %v732, %v731
        %v861 = vpack.c.b16 %v734, %v733
        %v862 = vpack.c.b16 %v736, %v735
        %v863 = vpack.c.b16 %v738, %v737
        %v864 = vpack.c.b16 %v740, %v739
        %v865 = vpack.c.b16 %v742, %v741
        %v866 = vpack.c.b16 %v744, %v743
        %v867 = vpack.c.b16 %v746, %v745
        %v868 = vpack.c.b16 %v748, %v747
        %v869 = vpack.c.b16 %v750, %v749
        %v870 = vpack.c.b16 %v752, %v751
        %v871 = vpack.c.b16 %v754, %v753
        %v872 = vpack.c.b16 %v756, %v755
        %v873 = vpack.c.b16 %v758, %v757
        %v874 = vpack.c.b16 %v760, %v759
        %v875 = vpack.c.b16 %v762, %v761
        %v876 = vpack.c.b16 %v764, %v763
        %v877 = vpack.c.b16 %v766, %v765
        %v878 = vpack.c.b16 %v768, %v767
        %v879 = vpack.c.b16 %v770, %v769
        %v880 = vpack.c.b16 %v772, %v771
        %v881 = vpack.c.b16 %v774, %v773
        %v882 = vpack.c.b16 %v776, %v775
        %v883 = vpack.c.b16 %v778, %v777
        %v884 = vpack.c.b16 %v780, %v779
        %v885 = vpack.c.b16 %v782, %v781
        %v886 = vpack.c.b16 %v784, %v783
        %v887 = vpack.c.b16 %v786, %v785
        %v888 = vpack.c.b16 %v788, %v787
        %v889 = vpack.c.b16 %v790, %v789
        %v890 = vpack.c.b16 %v792, %v791
        %v891 = vpack.c.b16 %v794, %v793
        %v892 = vpack.c.b16 %v796, %v795
        %v893 = vpack.c.b16 %v798, %v797
        %v894 = vpack.c.b16 %v800, %v799
        %v895 = vpack.c.b16 %v802, %v801
        %v896 = vpack.c.b16 %v804, %v803
        %v897 = vpack.c.b16 %v806, %v805
        %v898 = vpack.c.b16 %v808, %v807
        %v899 = vpack.c.b16 %v810, %v809
        %v900 = vpack.c.b16 %v812, %v811
        %v901 = vpack.c.b16 %v814, %v813
        %v902 = vpack.c.b16 %v816, %v815
        %v903 = vpack.c.b16 %v818, %v817
        %v904 = vpack.c.b16 %v820, %v819
        %v905 = vpack.c.b16 %v822, %v821
        %v906 = vpack.c.b16 %v824, %v823
        %v907 = vpack.c.b16 %v826, %v825
        %v908 = vpack.c.b16 %v828, %v827
        %v909 = vpack.c.b16 %v830, %v829
        %v910 = vpack.c.b16 %v832, %v831
        %v911 = vpack.c.b16 %v834, %v833
        %v912 = vpack.c.b16 %v836, %v835
        %v913 = vpack.c.b16 %v838, %v837
        %v914 = vpack.c.b16 %v840, %v839
        %v915 = vpack.c.b16 %v842, %v841
        %v916 = vpack.c.b16 %v844, %v843
        %989 = vmatprep.subr.bf16.mxu0 0
        %990 = vmatpush1.bf16.msra.mxu0 %v845
        %991 = vmatprep.subr.bf16.mxu0 0
        %992 = vmatpush1.bf16.msra.mxu0 %v846
        %993 = vmatprep.subr.bf16.mxu0 0
        %994 = vmatpush1.bf16.msra.mxu0 %v847
        %995 = vmatprep.subr.bf16.mxu0 0
        %996 = vmatpush1.bf16.msra.mxu0 %v848
        %997 = vmatprep.subr.bf16.mxu0 0
        %998 = vmatpush1.bf16.msra.mxu0 %v849
        %999 = vmatprep.subr.bf16.mxu0 0
        %1000 = vmatpush1.bf16.msra.mxu0 %v850
        %1001 = vmatprep.subr.bf16.mxu0 0
        %1002 = vmatpush1.bf16.msra.mxu0 %v851
        %1003 = vmatprep.subr.bf16.mxu0 0
        %1004 = vmatpush1.bf16.msra.mxu0 %v852
        %1005 = vmatprep.subr.bf16.mxu0 0
        %1006 = vmatpush1.bf16.msra.mxu0 %v853
        %1007 = vmatprep.subr.bf16.mxu0 0
        %1008 = vmatpush1.bf16.msra.mxu0 %v854
        %1009 = vmatprep.subr.bf16.mxu0 0
        %1010 = vmatpush1.bf16.msra.mxu0 %v855
        %1011 = vmatprep.subr.bf16.mxu0 0
        %1012 = vmatpush1.bf16.msra.mxu0 %v856
        %1013 = vmatprep.subr.bf16.mxu0 0
        %1014 = vmatpush1.bf16.msra.mxu0 %v857
        %1015 = vmatprep.subr.bf16.mxu0 0
        %1016 = vmatpush1.bf16.msra.mxu0 %v858
        %1017 = vmatprep.subr.bf16.mxu0 0
        %1018 = vmatpush1.bf16.msra.mxu0 %v859
        %1019 = vmatprep.subr.bf16.mxu0 0
        %1020 = vmatpush1.bf16.msra.mxu0 %v860
        %1021 = vmatprep.mubr.bf16.mxu0 %v303
        %1022 = vmatmul.mubr.bf16.gmra.mrb[0].mxu0 %v271
        %v1023 = vpop.f32.mrb[0].mxu0
        %v1024 = vadd.f32 0.0, %v1023
        %v1025 = vpop.f32.mrb[0].mxu0
        %v1026 = vpop.f32.mrb[0].mxu0
        %v1027 = vadd.f32 0.0, %v1026
        %v1028 = vpop.f32.mrb[0].mxu0
        %1029 = vmatprep.mubr.bf16.mxu0 %v315
        %1030 = vmatmul.mubr.bf16.gmra.mrb[0].mxu0 %v272
        %v1031 = vpop.f32.mrb[0].mxu0
        %v1032 = vadd.f32 0.0, %v1031
        %v1033 = vpop.f32.mrb[0].mxu0
        %v1034 = vpop.f32.mrb[0].mxu0
        %v1035 = vadd.f32 0.0, %v1034
        %v1036 = vpop.f32.mrb[0].mxu0
        %1037 = vmatprep.mubr.bf16.mxu0 %v327
        %1038 = vmatmul.mubr.bf16.gmra.mrb[0].mxu0 %v273
        %v1039 = vpop.f32.mrb[0].mxu0
        %v1040 = vadd.f32 0.0, %v1039
        %v1041 = vpop.f32.mrb[0].mxu0
        %v1042 = vpop.f32.mrb[0].mxu0
        %v1043 = vadd.f32 0.0, %v1042
        %v1044 = vpop.f32.mrb[0].mxu0
        %1045 = vmatprep.mubr.bf16.mxu0 %v339
        %1046 = vmatmul.mubr.bf16.gmra.mrb[0].mxu0 %v274
        %v1047 = vpop.f32.mrb[0].mxu0
        %v1048 = vadd.f32 0.0, %v1047
        %v1049 = vpop.f32.mrb[0].mxu0
        %v1050 = vpop.f32.mrb[0].mxu0
        %v1051 = vadd.f32 0.0, %v1050
        %v1052 = vpop.f32.mrb[0].mxu0
        %1053 = vdwg.mxu0
        %1054 = vmatprep.subr.bf16.mxu0 0
        %1055 = vmatpush1.bf16.msra.mxu0 %v861
        %1056 = vmatprep.subr.bf16.mxu0 0
        %1057 = vmatpush1.bf16.msra.mxu0 %v862
        %1058 = vmatprep.subr.bf16.mxu0 0
        %1059 = vmatpush1.bf16.msra.mxu0 %v863
        %1060 = vmatprep.subr.bf16.mxu0 0
        %1061 = vmatpush1.bf16.msra.mxu0 %v864
        %1062 = vmatprep.subr.bf16.mxu0 0
        %1063 = vmatpush1.bf16.msra.mxu0 %v865
        %1064 = vmatprep.subr.bf16.mxu0 0
        %1065 = vmatpush1.bf16.msra.mxu0 %v866
        %1066 = vmatprep.subr.bf16.mxu0 0
        %1067 = vmatpush1.bf16.msra.mxu0 %v867
        %1068 = vmatprep.subr.bf16.mxu0 0
        %1069 = vmatpush1.bf16.msra.mxu0 %v868
        %1070 = vmatprep.subr.bf16.mxu0 0
        %1071 = vmatpush1.bf16.msra.mxu0 %v869
        %1072 = vmatprep.subr.bf16.mxu0 0
        %1073 = vmatpush1.bf16.msra.mxu0 %v870
        %1074 = vmatprep.subr.bf16.mxu0 0
        %1075 = vmatpush1.bf16.msra.mxu0 %v871
        %1076 = vmatprep.subr.bf16.mxu0 0
        %1077 = vmatpush1.bf16.msra.mxu0 %v872
        %1078 = vmatprep.subr.bf16.mxu0 0
        %1079 = vmatpush1.bf16.msra.mxu0 %v873
        %1080 = vmatprep.subr.bf16.mxu0 0
        %1081 = vmatpush1.bf16.msra.mxu0 %v874
        %1082 = vmatprep.subr.bf16.mxu0 0
        %1083 = vmatpush1.bf16.msra.mxu0 %v875
        %1084 = vmatprep.subr.bf16.mxu0 0
        %1085 = vmatpush1.bf16.msra.mxu0 %v876
        %1086 = vmatprep.mubr.bf16.mxu0 %v272
        %1087 = vmatmul.mubr.bf16.gmra.mrb[0].mxu0 %v347
        %v1088 = vpop.f32.mrb[0].mxu0
        %v1089 = vadd.f32 %v1024, %v1088
        %v1090 = vpop.f32.mrb[0].mxu0
        %v1091 = vpop.f32.mrb[0].mxu0
        %v1092 = vadd.f32 %v1027, %v1091
        %v1093 = vpop.f32.mrb[0].mxu0
        %1094 = vmatprep.mubr.bf16.mxu0 %v273
        %1095 = vmatmul.mubr.bf16.gmra.mrb[0].mxu0 %v350
        %v1096 = vpop.f32.mrb[0].mxu0
        %v1097 = vadd.f32 %v1032, %v1096
        %v1098 = vpop.f32.mrb[0].mxu0
        %v1099 = vpop.f32.mrb[0].mxu0
        %v1100 = vadd.f32 %v1035, %v1099
        %v1101 = vpop.f32.mrb[0].mxu0
        %1102 = vmatprep.mubr.bf16.mxu0 %v274
        %1103 = vmatmul.mubr.bf16.gmra.mrb[0].mxu0 %v353
        %v1104 = vpop.f32.mrb[0].mxu0
        %v1105 = vadd.f32 %v1040, %v1104
        %v1106 = vpop.f32.mrb[0].mxu0
        %v1107 = vpop.f32.mrb[0].mxu0
        %v1108 = vadd.f32 %v1043, %v1107
        %v1109 = vpop.f32.mrb[0].mxu0
        %1110 = vmatprep.mubr.bf16.mxu0 %v365
        %1111 = vmatmul.mubr.bf16.gmra.mrb[0].mxu0 %v356
        %v1112 = vpop.f32.mrb[0].mxu0
        %v1113 = vadd.f32 %v1048, %v1112
        %v1114 = vpop.f32.mrb[0].mxu0
        %v1115 = vpop.f32.mrb[0].mxu0
        %v1116 = vadd.f32 %v1051, %v1115
        %v1117 = vpop.f32.mrb[0].mxu0
        %1118 = vdwg.mxu0
        %1119 = vmatprep.subr.bf16.mxu0 0
        %1120 = vmatpush1.bf16.msra.mxu0 %v877
        %1121 = vmatprep.subr.bf16.mxu0 0
        %1122 = vmatpush1.bf16.msra.mxu0 %v878
        %1123 = vmatprep.subr.bf16.mxu0 0
        %1124 = vmatpush1.bf16.msra.mxu0 %v879
        %1125 = vmatprep.subr.bf16.mxu0 0
        %1126 = vmatpush1.bf16.msra.mxu0 %v880
        %1127 = vmatprep.subr.bf16.mxu0 0
        %1128 = vmatpush1.bf16.msra.mxu0 %v881
        %1129 = vmatprep.subr.bf16.mxu0 0
        %1130 = vmatpush1.bf16.msra.mxu0 %v882
        %1131 = vmatprep.subr.bf16.mxu0 0
        %1132 = vmatpush1.bf16.msra.mxu0 %v883
        %1133 = vmatprep.subr.bf16.mxu0 0
        %1134 = vmatpush1.bf16.msra.mxu0 %v884
        %1135 = vmatprep.subr.bf16.mxu0 0
        %1136 = vmatpush1.bf16.msra.mxu0 %v885
        %1137 = vmatprep.subr.bf16.mxu0 0
        %1138 = vmatpush1.bf16.msra.mxu0 %v886
        %1139 = vmatprep.subr.bf16.mxu0 0
        %1140 = vmatpush1.bf16.msra.mxu0 %v887
        %1141 = vmatprep.subr.bf16.mxu0 0
        %1142 = vmatpush1.bf16.msra.mxu0 %v888
        %1143 = vmatprep.subr.bf16.mxu0 0
        %1144 = vmatpush1.bf16.msra.mxu0 %v889
        %1145 = vmatprep.subr.bf16.mxu0 0
        %1146 = vmatpush1.bf16.msra.mxu0 %v890
        %1147 = vmatprep.subr.bf16.mxu0 0
        %1148 = vmatpush1.bf16.msra.mxu0 %v891
        %1149 = vmatprep.subr.bf16.mxu0 0
        %1150 = vmatpush1.bf16.msra.mxu0 %v892
        %1151 = vmatprep.mubr.bf16.mxu0 %v350
        %1152 = vmatmul.mubr.bf16.gmra.mrb[0].mxu0 %v315
        %v1153 = vpop.f32.mrb[0].mxu0
        %v1154 = vadd.f32 %v1089, %v1153
        %v1155 = vpop.f32.mrb[0].mxu0
        %v1156 = vpop.f32.mrb[0].mxu0
        %v1157 = vadd.f32 %v1092, %v1156
        %v1158 = vpop.f32.mrb[0].mxu0
        %1159 = vmatprep.mubr.bf16.mxu0 %v353
        %1160 = vmatmul.mubr.bf16.gmra.mrb[0].mxu0 %v327
        %v1161 = vpop.f32.mrb[0].mxu0
        %v1162 = vadd.f32 %v1097, %v1161
        %v1163 = vpop.f32.mrb[0].mxu0
        %v1164 = vpop.f32.mrb[0].mxu0
        %v1165 = vadd.f32 %v1100, %v1164
        %v1166 = vpop.f32.mrb[0].mxu0
        %1167 = vmatprep.mubr.bf16.mxu0 %v356
        %1168 = vmatmul.mubr.bf16.gmra.mrb[0].mxu0 %v339
        %v1169 = vpop.f32.mrb[0].mxu0
        %v1170 = vadd.f32 %v1105, %v1169
        %v1171 = vpop.f32.mrb[0].mxu0
        %v1172 = vpop.f32.mrb[0].mxu0
        %v1173 = vadd.f32 %v1108, %v1172
        %v1174 = vpop.f32.mrb[0].mxu0
        %1175 = vmatprep.mubr.bf16.mxu0 %v385
        %1176 = vmatmul.mubr.bf16.gmra.mrb[0].mxu0 %v381
        %v1177 = vpop.f32.mrb[0].mxu0
        %v1178 = vadd.f32 %v1113, %v1177
        %v1179 = vpop.f32.mrb[0].mxu0
        %v1180 = vpop.f32.mrb[0].mxu0
        %v1181 = vadd.f32 %v1116, %v1180
        %v1182 = vpop.f32.mrb[0].mxu0
        %1183 = vdwg.mxu0
        %1184 = vmatprep.subr.bf16.mxu0 0
        %1185 = vmatpush1.bf16.msra.mxu0 %v893
        %1186 = vmatprep.subr.bf16.mxu0 0
        %1187 = vmatpush1.bf16.msra.mxu0 %v894
        %1188 = vmatprep.subr.bf16.mxu0 0
        %1189 = vmatpush1.bf16.msra.mxu0 %v895
        %1190 = vmatprep.subr.bf16.mxu0 0
        %1191 = vmatpush1.bf16.msra.mxu0 %v896
        %1192 = vmatprep.subr.bf16.mxu0 0
        %1193 = vmatpush1.bf16.msra.mxu0 %v897
        %1194 = vmatprep.subr.bf16.mxu0 0
        %1195 = vmatpush1.bf16.msra.mxu0 %v898
        %1196 = vmatprep.subr.bf16.mxu0 0
        %1197 = vmatpush1.bf16.msra.mxu0 %v899
        %1198 = vmatprep.subr.bf16.mxu0 0
        %1199 = vmatpush1.bf16.msra.mxu0 %v900
        %1200 = vmatprep.subr.bf16.mxu0 0
        %1201 = vmatpush1.bf16.msra.mxu0 %v901
        %1202 = vmatprep.subr.bf16.mxu0 0
        %1203 = vmatpush1.bf16.msra.mxu0 %v902
        %1204 = vmatprep.subr.bf16.mxu0 0
        %1205 = vmatpush1.bf16.msra.mxu0 %v903
        %1206 = vmatprep.subr.bf16.mxu0 0
        %1207 = vmatpush1.bf16.msra.mxu0 %v904
        %1208 = vmatprep.subr.bf16.mxu0 0
        %1209 = vmatpush1.bf16.msra.mxu0 %v905
        %1210 = vmatprep.subr.bf16.mxu0 0
        %1211 = vmatpush1.bf16.msra.mxu0 %v906
        %1212 = vmatprep.subr.bf16.mxu0 0
        %1213 = vmatpush1.bf16.msra.mxu0 %v907
        %1214 = vmatprep.subr.bf16.mxu0 0
        %1215 = vmatpush1.bf16.msra.mxu0 %v908
        %1216 = vmatprep.mubr.bf16.mxu0 %v327
        %1217 = vmatmul.mubr.bf16.gmra.mrb[0].mxu0 %v273
        %v1218 = vpop.f32.mrb[0].mxu0
        %v1219 = vadd.f32 %v1154, %v1218
        %v1220 = vpop.f32.mrb[0].mxu0
        %v1221 = vpop.f32.mrb[0].mxu0
        %v1222 = vadd.f32 %v1157, %v1221
        %v1223 = vpop.f32.mrb[0].mxu0
        %1224 = vmatprep.mubr.bf16.mxu0 %v339
        %1225 = vmatmul.mubr.bf16.gmra.mrb[0].mxu0 %v274
        %v1226 = vpop.f32.mrb[0].mxu0
        %v1227 = vadd.f32 %v1162, %v1226
        %v1228 = vpop.f32.mrb[0].mxu0
        %v1229 = vpop.f32.mrb[0].mxu0
        %v1230 = vadd.f32 %v1165, %v1229
        %v1231 = vpop.f32.mrb[0].mxu0
        %1232 = vmatprep.mubr.bf16.mxu0 %v381
        %1233 = vmatmul.mubr.bf16.gmra.mrb[0].mxu0 %v365
        %v1234 = vpop.f32.mrb[0].mxu0
        %v1235 = vadd.f32 %v1170, %v1234
        %v1236 = vpop.f32.mrb[0].mxu0
        %v1237 = vpop.f32.mrb[0].mxu0
        %v1238 = vadd.f32 %v1173, %v1237
        %v1239 = vpop.f32.mrb[0].mxu0
        %1240 = vmatprep.mubr.bf16.mxu0 %v407
        %1241 = vmatmul.mubr.bf16.gmra.mrb[0].mxu0 %v391
        %v1242 = vpop.f32.mrb[0].mxu0
        %v1243 = vadd.f32 %v1178, %v1242
        %v1244 = vpop.f32.mrb[0].mxu0
        %v1245 = vpop.f32.mrb[0].mxu0
        %v1246 = vadd.f32 %v1181, %v1245
        %v1247 = vpop.f32.mrb[0].mxu0
        %1248 = vdwg.mxu0
        %1249 = vmatprep.subr.bf16.mxu0 0
        %1250 = vmatpush1.bf16.msra.mxu0 %v909
        %1251 = vmatprep.subr.bf16.mxu0 0
        %1252 = vmatpush1.bf16.msra.mxu0 %v910
        %1253 = vmatprep.subr.bf16.mxu0 0
        %1254 = vmatpush1.bf16.msra.mxu0 %v911
        %1255 = vmatprep.subr.bf16.mxu0 0
        %1256 = vmatpush1.bf16.msra.mxu0 %v912
        %1257 = vmatprep.subr.bf16.mxu0 0
        %1258 = vmatpush1.bf16.msra.mxu0 %v913
        %1259 = vmatprep.subr.bf16.mxu0 0
        %1260 = vmatpush1.bf16.msra.mxu0 %v914
        %1261 = vmatprep.subr.bf16.mxu0 0
        %1262 = vmatpush1.bf16.msra.mxu0 %v915
        %1263 = vmatprep.subr.bf16.mxu0 0
        %1264 = vmatpush1.bf16.msra.mxu0 %v916
        %1265 = vmatprep.subr.bf16.mxu0 0
        %1266 = vmatpush1.bf16.msra.mxu0 0
        %1267 = vmatprep.subr.bf16.mxu0 0
        %1268 = vmatpush1.bf16.msra.mxu0 0
        %1269 = vmatprep.subr.bf16.mxu0 0
        %1270 = vmatpush1.bf16.msra.mxu0 0
        %1271 = vmatprep.subr.bf16.mxu0 0
        %1272 = vmatpush1.bf16.msra.mxu0 0
        %1273 = vmatprep.subr.bf16.mxu0 0
        %1274 = vmatpush1.bf16.msra.mxu0 0
        %1275 = vmatprep.subr.bf16.mxu0 0
        %1276 = vmatpush1.bf16.msra.mxu0 0
        %1277 = vmatprep.subr.bf16.mxu0 0
        %1278 = vmatpush1.bf16.msra.mxu0 0
        %1279 = vmatprep.subr.bf16.mxu0 0
        %1280 = vmatpush1.bf16.msra.mxu0 0
        %1281 = vmatprep.mubr.bf16.mxu0 0
        %1282 = vmatmul.mubr.bf16.gmra.mrb[0].mxu0 %v353
        %v1283 = vpop.f32.mrb[0].mxu0
        %v1284 = vadd.f32 %v1219, %v1283
        %v1285 = vpop.f32.mrb[0].mxu0
        %v1286 = vpop.f32.mrb[0].mxu0
        %v1287 = vadd.f32 %v1222, %v1286
        %v1288 = vpop.f32.mrb[0].mxu0
        %1289 = vmatprep.mubr.bf16.mxu0 0
        %1290 = vmatmul.mubr.bf16.gmra.mrb[0].mxu0 %v356
        %v1291 = vpop.f32.mrb[0].mxu0
        %v1292 = vadd.f32 %v1227, %v1291
        %v1293 = vpop.f32.mrb[0].mxu0
        %v1294 = vpop.f32.mrb[0].mxu0
        %v1295 = vadd.f32 %v1230, %v1294
        %v1296 = vpop.f32.mrb[0].mxu0
        %1297 = vmatprep.mubr.bf16.mxu0 0
        %1298 = vmatmul.mubr.bf16.gmra.mrb[0].mxu0 %v385
        %v1299 = vpop.f32.mrb[0].mxu0
        %v1300 = vadd.f32 %v1235, %v1299
        %v1301 = vpop.f32.mrb[0].mxu0
        %v1302 = vpop.f32.mrb[0].mxu0
        %v1303 = vadd.f32 %v1238, %v1302
        %v1304 = vpop.f32.mrb[0].mxu0
        %1305 = vmatprep.mubr.bf16.mxu0 0
        %1306 = vmatmul.mubr.bf16.gmra.mrb[0].mxu0 %v411
        %v1307 = vpop.f32.mrb[0].mxu0
        %v1308 = vadd.f32 %v1243, %v1307
        %v1309 = vpop.f32.mrb[0].mxu0
        %v1310 = vpop.f32.mrb[0].mxu0
        %v1311 = vadd.f32 %v1246, %v1310
        %v1312 = vpop.f32.mrb[0].mxu0
        %1313 = vdwg.mxu0
        %v1314 = vmul.f32 %v1284, 0.2
        %v1315 = vmul.f32 %v1287, 0.2
        %v1316 = vmul.f32 %v1292, 0.2
        %v1317 = vmul.f32 %v1295, 0.2
        %v1318 = vmul.f32 %v1300, 0.2
        %v1319 = vmul.f32 %v1303, 0.2
        %v1320 = vmul.f32 %v1308, 0.2
        %v1321 = vmul.f32 %v1311, 0.2
        %v1322 = vmax.f32 %v1284, %v1314
        %v1323 = vmax.f32 %v1287, %v1315
        %v1324 = vmax.f32 %v1292, %v1316
        %v1325 = vmax.f32 %v1295, %v1317
        %v1326 = vmax.f32 %v1300, %v1318
        %v1327 = vmax.f32 %v1303, %v1319
        %v1328 = vmax.f32 %v1308, %v1320
        %v1329 = vmax.f32 %v1311, %v1321
        %v1330 = vpack.c.bf16 %v1323, %v1322
        %v1331 = vpack.c.bf16 %v1325, %v1324
        %v1332 = vpack.c.bf16 %v1327, %v1326
        %v1333 = vpack.c.bf16 %v1329, %v1328
        %v1335 = vshrl.u32 %v1330, 16
        %v1337 = vrot.slane %v1335, 7
        %v1338 = vshll.u32 %v1330, 16
        %v1340 = vor.u32 %v1337, %v1338
        %v1342 = vshrl.u32 %v1331, 16
        %v1344 = vrot.slane %v1342, 7
        %v1345 = vshll.u32 %v1331, 16
        %v1347 = vor.u32 %v1344, %v1345
        %v1349 = vshrl.u32 %v1332, 16
        %v1351 = vrot.slane %v1349, 7
        %v1352 = vshll.u32 %v1332, 16
        %v1354 = vor.u32 %v1351, %v1352
        %v1356 = vshrl.u32 %v1333, 16
        %v1358 = vrot.slane %v1356, 7
        %v1359 = vshll.u32 %v1333, 16
        %v1361 = vor.u32 %v1358, %v1359
        %vm1370 = vcmask 1040384
        %vm1371 = vsmask.f32 256
        %vm1372 = vmand %vm1370, %vm1371
        %v1373 = vsel %vm1372, 0, %v1340
        %v1374 = vsel %vm1372, 0, %v1347
        %v1375 = vsel %vm1372, 0, %v1354
        %v1376 = vsel %vm1372, 0, %v1361
        %v1377 = vsel %vm1372, %v1337, 0
        %v1378 = vsel %vm1372, %v1344, 0
        %v1379 = vsel %vm1372, %v1351, 0
        %v1380 = vsel %vm1372, %v1358, 0
        %v1389 = vunpack.c.l.b16 %v1373
        %v1390 = vunpack.c.h.b16 %v1373
        %v1391 = vunpack.c.l.b16 %v1377
        %v1392 = vunpack.c.l.b16 %v1374
        %v1393 = vunpack.c.h.b16 %v1374
        %v1394 = vunpack.c.l.b16 %v1378
        %v1395 = vunpack.c.l.b16 %v1375
        %v1396 = vunpack.c.h.b16 %v1375
        %v1397 = vunpack.c.l.b16 %v1379
        %v1398 = vunpack.c.l.b16 %v1376
        %v1399 = vunpack.c.h.b16 %v1376
        %v1400 = vunpack.c.l.b16 %v1380
        %v1401 = vpack.c.b16 %v1389, %v1389
        %v1402 = vpack.c.b16 %v1390, %v1390
        %v1403 = vpack.c.b16 %v1391, %v1391
        %v1404 = vpack.c.b16 %v1392, %v1392
        %v1405 = vpack.c.b16 %v1393, %v1393
        %v1406 = vpack.c.b16 %v1394, %v1394
        %v1407 = vpack.c.b16 %v1395, %v1395
        %v1408 = vpack.c.b16 %v1396, %v1396
        %v1409 = vpack.c.b16 %v1397, %v1397
        %v1410 = vpack.c.b16 %v1398, %v1398
        %v1411 = vpack.c.b16 %v1399, %v1399
        %v1412 = vpack.c.b16 %v1400, %v1400
        %1425 = vst [vmem:[%s204] sm:$0xf] %v1401
        %1426 = vst [vmem:[%s204 + $0x4] sm:$0xf] %v1402
        %1427 = vst [vmem:[%s204 + $0x8] sm:$0x1] %v1403
        %1428 = vst [vmem:[%s204 + $0xc] sm:$0xf] %v1404
        %1429 = vst [vmem:[%s204 + $0x10] sm:$0xf] %v1405
        %1430 = vst [vmem:[%s204 + $0x14] sm:$0x1] %v1406
        %1431 = vst [vmem:[%s204 + $0x18] sm:$0xf] %v1407
        %1432 = vst [vmem:[%s204 + $0x1c] sm:$0xf] %v1408
        %1433 = vst [vmem:[%s204 + $0x20] sm:$0x1] %v1409
        %1434 = vst [vmem:[%s204 + $0x24] sm:$0xf] %v1410
        %1435 = vst [vmem:[%s204 + $0x28] sm:$0xf] %v1411
        %1436 = vst [vmem:[%s204 + $0x2c] sm:$0x1] %v1412
        %p1437 = scmp.eq.s32.totalorder %s23, 0
        // Predicated region
        $region29: #{tpu_custom_call.1} parent=27 // pred_check
          %p1438 = pneg %p1437
        $region30: #{tpu_custom_call.1} parent=27 // pred_check_branch
          %1440 = sbr.rel (%p1438) target = $region32
        $region31: #{tpu_custom_call.1} parent=27 // pred_region
          %1441 = vst [vmem:[%s189] sm:$0x1] 0.0
        $region32: #{tpu_custom_call.1} parent=27 // pred_fallthru
          _
        %v1442 = vld [vmem:[%s189] sm:$0x1]
        %v1443 = vunpack.c.l.bf16 %v1330
        %v1444 = vunpack.c.h.bf16 %v1330
        %v1445 = vunpack.c.l.bf16 %v1331
        %v1446 = vunpack.c.h.bf16 %v1331
        %v1447 = vunpack.c.l.bf16 %v1332
        %v1448 = vunpack.c.h.bf16 %v1332
        %v1449 = vunpack.c.l.bf16 %v1333
        %v1450 = vunpack.c.h.bf16 %v1333
        %v1451 = vadd.f32 %v1443, %v1444
        %v1452 = vadd.f32 %v1451, %v1445
        %v1453 = vadd.f32 %v1452, %v1446
        %v1454 = vadd.f32 %v1453, %v1447
        %v1455 = vadd.f32 %v1454, %v1448
        %v1456 = vadd.f32 %v1455, %v1449
        %v1457 = vadd.f32 %v1456, %v1450
        %v1458 = vrot.slane %v1457, 4
        %v1459 = vadd.f32 %v1457, %v1458
        %v1460 = vrot.slane %v1459, 2
        %v1461 = vadd.f32 %v1459, %v1460
        %v1462 = vrot.slane %v1461, 1
        %v1463 = vadd.f32 %v1461, %v1462
        %v1464 = vadd.f32 %v1442, %v1463
        %1465 = vst [vmem:[%s189] sm:$0x1] %v1464
        %s1466 = smul.u32 4, %s23
        %p1467 = scmp.lt.s32.totalorder %s22, 1
        %s1468 = scalar_select %p1467, %s22, 1
        %p1469 = scmp.lt.s32.totalorder %s1466, 15
        %s1470 = scalar_select %p1469, %s1466, 15
        %s1471 = smul.addr %s1470, 3
        %s1472 = smul.addr %s1468, 48
        %s1473 = sadd.s32 %s1471, %s1472
        %s1474 = smul.addr %s1473, 4
        %s1475 = scalar_lea.vmem %s2, %s1474
        %s1476 = sand.u32 %s113, 1
        %s1477 = scalar_lea.sflag [#allocation3], %s1476
        %s1478 = sand.u32 %s113, 1
        %s1479 = scalar_lea.vmem [#allocation2], %s1478
        // Predicated region
        $region33: #{tpu_custom_call.1} parent=27 // pred_check
          %p1480 = pneg %p97
        $region34: #{tpu_custom_call.1} parent=27 // pred_check_branch
          %1482 = sbr.rel (%p1480) target = $region36
        $region35: #{tpu_custom_call.1} parent=27 // pred_region
          %s1483 = smul.u32 4, %s23
        $region36: #{tpu_custom_call.1} parent=27 // pred_fallthru
          _
        // Predicated region
        $region37: #{tpu_custom_call.1} parent=27 // pred_check
          %p1484 = pneg %p123
        $region38: #{tpu_custom_call.1} parent=27 // pred_check_branch
          %1486 = sbr.rel (%p1484) target = $region40
        $region39: #{tpu_custom_call.1} parent=27 // pred_region
          %s1488 = ssub.s32 16, 16
          %1489 = vsyncadd %s1477, %s1488
          %s1490 = smul.addr %s22, 16
          %s1491 = scalar_lea.hbm %s3, %s1490
          %s1493 = sshll.u32 %s1479, 4
          %s1494 = int_to_ptr.vmem [resolvable:$true] %s1493
          %1496 = dma.vmem_to_hbm [thread:$0]  %s1494, 16, %s1491, %s1477
        $region40: #{tpu_custom_call.1} parent=27 // pred_fallthru
          _
      $region28: #{tpu_custom_call.1} parent=5 // pred_fallthru
        _
      %p1497 = scmp.le.s32.totalorder 2, %s13
      // Predicated region
      $region41: #{tpu_custom_call.1} parent=5 // pred_check
        %p1498 = pneg %p1497
      $region42: #{tpu_custom_call.1} parent=5 // pred_check_branch
        %1500 = sbr.rel (%p1498) target = $region44
      $region43: #{tpu_custom_call.1} parent=5 // pred_region
        %s1501 = ssub.s32 %s13, 2
        // Predicated region
        $region45: #{tpu_custom_call.1} parent=43 // pred_check
          %p1502 = pneg %p103
        $region46: #{tpu_custom_call.1} parent=43 // pred_check_branch
          %1504 = sbr.rel (%p1502) target = $region48
        $region47: #{tpu_custom_call.1} parent=43 // pred_region
          %s1505 = smul.u32 4, %s25
          %p1506 = scmp.lt.s32.totalorder %s24, 1
          %s1507 = scalar_select %p1506, %s24, 1
          %p1508 = scmp.lt.s32.totalorder %s1505, 15
          %s1509 = scalar_select %p1508, %s1505, 15
          %s1510 = smul.addr %s1509, 3
          %s1511 = smul.addr %s1507, 48
          %s1512 = sadd.s32 %s1510, %s1511
          %s1513 = smul.addr %s1512, 4
          %s1514 = scalar_lea.vmem %s2, %s1513
        $region48: #{tpu_custom_call.1} parent=43 // pred_fallthru
          _
        // Predicated region
        $region49: #{tpu_custom_call.1} parent=43 // pred_check
          %p1515 = pneg %p129
        $region50: #{tpu_custom_call.1} parent=43 // pred_check_branch
          %1517 = sbr.rel (%p1515) target = $region52
        $region51: #{tpu_custom_call.1} parent=43 // pred_region
          %s1518 = sand.u32 %s114, 1
          %s1519 = scalar_lea.sflag [#allocation3], %s1518
          %s1520 = sand.u32 %s114, 1
          %s1521 = scalar_lea.vmem [#allocation2], %s1520
          %1522 = dma.done %s1519, 16
        $region52: #{tpu_custom_call.1} parent=43 // pred_fallthru
          _
      $region44: #{tpu_custom_call.1} parent=5 // pred_fallthru
        _
    $region6: #{tpu_custom_call.1} parent=1 // loop_footer
      %s17 = sadd.s32 1, %s13
    $region7: #{tpu_custom_call.1} parent=1 // loop_footer_branch
      %12 = sbr.rel target = $region3
    $region8: #{tpu_custom_call.1} parent=1 // loop_exit
      _
    %1523 = vsyncpa [#allocation3], 1
    %s1524 = scalar_lea.sflag [#allocation3], 1
    %1525 = vsyncpa %s1524, 1

</llo_original>
